<compile_context>
chip_gen: v6e
topology: v6e:2x2x1
jax: 0.10.0
libtpu: 0.0.40
codegen_flags: <defaults>
</compile_context>

<pallas_src>
import jax
import jax.numpy as jnp
from jax import lax
from jax.experimental import pallas as pl
from jax.experimental.pallas import tpu as pltpu


def _round_up(n, m):
    return ((n + m - 1) // m) * m


def _vmem_limit_bytes(default=48 * 1024 * 1024):
    """Generation-aware VMEM limit: ~3/4 of physical VMEM, capped at 96 MiB."""
    try:
        cap = getattr(pltpu.get_tpu_info(), "vmem_capacity_bytes", None)
        if not cap:
            return default
        return int(min(max(cap * 3 // 4, 32 * 1024 * 1024), 96 * 1024 * 1024))
    except Exception:
        return default


# -----------------------------------------------------------------------------
# Kernel
# -----------------------------------------------------------------------------
def net2_kernel(x_ref, w_fc_ref, b_fc_ref, bn_s_ref, bn_b_ref,
                w_h_ref, b_h_ref, w_out_ref, b_out_ref, out_ref):
    # x is already bf16 (cast in the wrapper); BN0 is folded into fc offline.
    h = jnp.dot(x_ref[...], w_fc_ref[...],
                preferred_element_type=jnp.float32) + b_fc_ref[...]   # (TB, Hp) f32

    # 3 residual hidden blocks, statically unrolled (keeps LLO visibility).
    for i in range(3):
        h = h * bn_s_ref[i] + bn_b_ref[i]        # BN_i folded affine (f32 VPU)
        residual = h
        z = jnp.dot(h.astype(jnp.bfloat16), w_h_ref[i],
                    preferred_element_type=jnp.float32) + b_h_ref[i]
        # Dropout_i == identity in eval mode.
        h = jnp.maximum(z, 0.0) + residual

    # Compact transposed output: (O, TB).  O=8 f32 sublanes, TB lanes (128-
    # multiple) -> unmasked, lane-dense store; no 8->128 output padding.
    out_ref[...] = lax.dot_general(
        w_out_ref[...], h,
        dimension_numbers=(((1,), (1,)), ((), ())),
        preferred_element_type=jnp.float32) + b_out_ref[...]


# -----------------------------------------------------------------------------
# Wrapper: BN0 folding, hidden-dim padding, bf16 weight cast, batch-tiled call
# -----------------------------------------------------------------------------
def fold_and_pad_params(p, lane=128):
    """Fold BN0 into fc, pad the hidden dim to a lane multiple, cast matmul
    weights to bf16.  Feature dim and output dim are left unpadded."""
    F, H = p["w_fc"].shape
    O = p["w_out"].shape[1]
    Hp = _round_up(H, lane)

    # Fold BN0 into fc:  (x*s0+b0)@W + b  ==  x@(s0[:,None]*W) + (b0@W + b)
    s0 = p["bn0_scale"].reshape(F, 1)
    b0 = p["bn0_shift"].reshape(1, F)
    w_fc = s0 * p["w_fc"]
    b_fc = b0 @ p["w_fc"] + p["b_fc"]

    def pad_cols(a, c):
        return jnp.pad(a, ((0, 0), (0, c - a.shape[1])))

    kp = dict(
        w_fc=pad_cols(w_fc, Hp).astype(jnp.bfloat16),                    # (F, Hp)
        b_fc=pad_cols(b_fc, Hp),                                         # (1, Hp)
        bn_scale=jnp.pad(p["bn_scale"], ((0, 0), (0, 0), (0, Hp - H))),  # (3,1,Hp)
        bn_shift=jnp.pad(p["bn_shift"], ((0, 0), (0, 0), (0, Hp - H))),  # (3,1,Hp)
        w_h=jnp.pad(p["w_h"], ((0, 0), (0, Hp - H), (0, Hp - H))).astype(jnp.bfloat16),
        b_h=jnp.pad(p["b_h"], ((0, 0), (0, 0), (0, Hp - H))),            # (3,1,Hp)
        # Transposed output weight (O, Hp), kept f32 (exactly one f32 tile,
        # MXU-tiny) and bias as a column so it broadcasts over (O, TB).
        w_out_t=jnp.pad(p["w_out"].T, ((0, 0), (0, Hp - H))),            # (O, Hp)
        b_out_t=p["b_out"].reshape(O, 1),                                # (O, 1)
        dims=(F, H, O),
        hp=Hp,
    )
    return kp


def net2_forward(x, kp, *, block_b=1024):
    """x: (B, n_feature) float32.  kp: output of fold_and_pad_params."""
    F, H, O = kp["dims"]
    Hp = kp["hp"]
    B = x.shape[0]

    # Batch tile: multiple of 128 so the transposed (O, TB) output store is
    # lane-dense and bf16 x satisfies its 16-sublane packing.
    TB = min(block_b, _round_up(B, 128))
    # v7x megacore: prefer >= 2 grid steps when the tile stays a 128-multiple,
    # so the "parallel" batch axis actually splits across both TensorCores.
    if _round_up(B, TB) // TB < 2 and TB % 256 == 0:
        TB //= 2
    Bp = _round_up(B, TB)

    # Pad only along batch; feature dim stays F.  Cast to bf16 in the wrapper.
    x_p = jnp.pad(x.astype(jnp.bfloat16), ((0, Bp - B), (0, 0)))

    def resident(shape):
        # Constant index_map -> stays resident in VMEM across grid steps.
        # (Default double-buffering is fine: total weights ~200 KB at Hp=128.)
        return pl.BlockSpec(shape, lambda i, _n=len(shape): (0,) * _n)

    out_t = pl.pallas_call(
        net2_kernel,
        out_shape=jax.ShapeDtypeStruct((O, Bp), jnp.float32),
        grid=(Bp // TB,),
        in_specs=[
            pl.BlockSpec((TB, F), lambda i: (i, 0)),    # x: batch-tiled, bf16
            resident((F, Hp)),                          # w_fc (bf16, BN0 folded)
            resident((1, Hp)),                          # b_fc (f32)
            resident((3, 1, Hp)),                       # BN scales (f32)
            resident((3, 1, Hp)),                       # BN shifts (f32)
            resident((3, Hp, Hp)),                      # hidden weights (bf16)
            resident((3, 1, Hp)),                       # hidden biases (f32)
            resident((O, Hp)),                          # w_out^T (f32)
            resident((O, 1)),                           # b_out column (f32)
        ],
        out_specs=pl.BlockSpec((O, TB), lambda i: (0, i)),
        compiler_params=pltpu.CompilerParams(
            dimension_semantics=("parallel",),
            vmem_limit_bytes=_vmem_limit_bytes(),
        ),
    )(x_p, kp["w_fc"], kp["b_fc"], kp["bn_scale"], kp["bn_shift"],
      kp["w_h"], kp["b_h"], kp["w_out_t"], kp["b_out_t"])

    # Tiny (O, B) -> (B, O) transpose in the wrapper.
    return out_t[:, :B].T


# -----------------------------------------------------------------------------
# Parameter construction and references
# -----------------------------------------------------------------------------
def make_params(key, n_feature, n_hidden, n_output, eps=1e-5):
    """Deterministic synthetic parameters; BN folded to scale/shift (eval mode)."""
    ks = jax.random.split(key, 16)

    def bn_fold(kg, kb, km, kv, n):
        gamma = jax.random.uniform(kg, (n,), jnp.float32, 0.5, 1.5)
        beta = jax.random.normal(kb, (n,), jnp.float32) * 0.1
        rmean = jax.random.normal(km, (n,), jnp.float32) * 0.1
        rvar = jax.random.uniform(kv, (n,), jnp.float32, 0.5, 1.5)
        scale = gamma / jnp.sqrt(rvar + eps)
        shift = beta - rmean * scale
        return scale.reshape(1, n), shift.reshape(1, n)

    bn0_scale, bn0_shift = bn_fold(ks[0], ks[1], ks[2], ks[3], n_feature)

    bn_s, bn_b = [], []
    for i in range(3):
        s, b = bn_fold(*jax.random.split(ks[4 + i], 4), n_hidden)
        bn_s.append(s)
        bn_b.append(b)
    bn_scale = jnp.stack(bn_s)          # (3, 1, H)
    bn_shift = jnp.stack(bn_b)          # (3, 1, H)

    def linear(k, n_in, n_out):
        kw, kb = jax.random.split(k)
        bound = 1.0 / jnp.sqrt(n_in)
        w = jax.random.uniform(kw, (n_in, n_out), jnp.float32, -bound, bound)
        b = jax.random.uniform(kb, (1, n_out), jnp.float32, -bound, bound)
        return w, b

    w_fc, b_fc = linear(ks[7], n_feature, n_hidden)
    w_h, b_h = [], []
    for i in range(3):
        w, b = linear(ks[8 + i], n_hidden, n_hidden)
        w_h.append(w)
        b_h.append(b)
    w_h = jnp.stack(w_h)                # (3, H, H)
    b_h = jnp.stack(b_h)                # (3, 1, H)
    w_out, b_out = linear(ks[11], n_hidden, n_output)

    return dict(bn0_scale=bn0_scale, bn0_shift=bn0_shift,
                w_fc=w_fc, b_fc=b_fc,
                bn_scale=bn_scale, bn_shift=bn_shift,
                w_h=w_h, b_h=b_h,
                w_out=w_out, b_out=b_out)


def net2_reference_f32(x, p):
    """Pure-JAX f32 reference of the eval-mode forward pass (module semantics)."""
    h = x * p["bn0_scale"] + p["bn0_shift"]
    h = h @ p["w_fc"] + p["b_fc"]
    for i in range(3):
        h = h * p["bn_scale"][i] + p["bn_shift"][i]
        r = h
        z = h @ p["w_h"][i] + p["b_h"][i]
        h = jnp.maximum(z, 0.0) + r
    return h @ p["w_out"] + p["b_out"]


def net2_reference_mirror(x, kp):
    """Mirrors the kernel math exactly (folded BN0, bf16 hidden matmuls with
    f32 accumulation, f32 transposed output layer)."""
    F, H, O = kp["dims"]
    h = jnp.dot(x.astype(jnp.bfloat16), kp["w_fc"],
                preferred_element_type=jnp.float32) + kp["b_fc"]
    for i in range(3):
        h = h * kp["bn_scale"][i] + kp["bn_shift"][i]
        r = h
        z = jnp.dot(h.astype(jnp.bfloat16), kp["w_h"][i],
                    preferred_element_type=jnp.float32) + kp["b_h"][i]
        h = jnp.maximum(z, 0.0) + r
    out_t = lax.dot_general(kp["w_out_t"], h,
                            dimension_numbers=(((1,), (1,)), ((), ())),
                            preferred_element_type=jnp.float32) + kp["b_out_t"]
    return out_t.T                                   # (B, O)


if __name__ == "__main__":
    n_feature, n_hidden, n_output = 16, 32, 8

    key = jax.random.PRNGKey(0)
    kx, kparam = jax.random.split(key)
    params = make_params(kparam, n_feature, n_hidden, n_output)
    kparams = fold_and_pad_params(params)

    # --- small batch, single grid step -------------------------------------
    B = 8
    x = jax.random.normal(kx, (B, n_feature), jnp.float32)
    out = jax.block_until_ready(net2_forward(x, kparams))
    assert out.shape == (B, n_output)

    ref_mirror = net2_reference_mirror(x, kparams)
    assert jnp.allclose(out, ref_mirror, atol=2e-3, rtol=2e-3), \
        "mismatch vs bf16-mirrored reference (small batch)"
    ref_f32 = net2_reference_f32(x, params)
    assert jnp.allclose(out, ref_f32, atol=5e-2, rtol=5e-2), \
        "mismatch vs f32 semantic reference (small batch)"

    # --- multi-grid-step batch (exercises batch padding + output index_map) -
    B2 = 300
    x2 = jax.random.normal(jax.random.PRNGKey(1), (B2, n_feature), jnp.float32)
    out2 = jax.block_until_ready(net2_forward(x2, kparams, block_b=128))
    assert out2.shape == (B2, n_output)
    assert jnp.allclose(out2, net2_reference_mirror(x2, kparams),
                        atol=2e-3, rtol=2e-3), \
        "mismatch vs bf16-mirrored reference (multi-step batch)"

    print("KERNEL_OK")
</pallas_src>

<mosaic_0001>
module attributes {stable_mosaic.version = 11 : i64} {
  func.func @net2_kernel(%arg0: i32, %arg1: memref<128x16xbf16, #tpu.memory_space<vmem>>, %arg2: memref<16x128xbf16, #tpu.memory_space<vmem>>, %arg3: memref<1x128xf32, #tpu.memory_space<vmem>>, %arg4: memref<3x1x128xf32, #tpu.memory_space<vmem>>, %arg5: memref<3x1x128xf32, #tpu.memory_space<vmem>>, %arg6: memref<3x128x128xbf16, #tpu.memory_space<vmem>>, %arg7: memref<3x1x128xf32, #tpu.memory_space<vmem>>, %arg8: memref<8x128xf32, #tpu.memory_space<vmem>>, %arg9: memref<8x1xf32, #tpu.memory_space<vmem>>, %arg10: memref<8x128xf32, #tpu.memory_space<vmem>>) attributes {dimension_semantics = [#tpu.dimension_semantics<parallel>], iteration_bounds = array<i64: 1>, scalar_prefetch = 0 : i64, scratch_operands = 0 : i64, tpu.core_type = #tpu.core_type<tc>, window_params = [{transform_indices = @transform_0, window_bounds = array<i64: 128, 16>}, {pipeline_mode = #tpu.pipeline_mode<synchronous>, transform_indices = @transform_1, window_bounds = array<i64: 16, 128>}, {pipeline_mode = #tpu.pipeline_mode<synchronous>, transform_indices = @transform_2, window_bounds = array<i64: 1, 128>}, {pipeline_mode = #tpu.pipeline_mode<synchronous>, transform_indices = @transform_3, window_bounds = array<i64: 3, 1, 128>}, {pipeline_mode = #tpu.pipeline_mode<synchronous>, transform_indices = @transform_4, window_bounds = array<i64: 3, 1, 128>}, {pipeline_mode = #tpu.pipeline_mode<synchronous>, transform_indices = @transform_5, window_bounds = array<i64: 3, 128, 128>}, {pipeline_mode = #tpu.pipeline_mode<synchronous>, transform_indices = @transform_6, window_bounds = array<i64: 3, 1, 128>}, {pipeline_mode = #tpu.pipeline_mode<synchronous>, transform_indices = @transform_7, window_bounds = array<i64: 8, 128>}, {pipeline_mode = #tpu.pipeline_mode<synchronous>, transform_indices = @transform_8, window_bounds = array<i64: 8, 1>}, {transform_indices = @transform_9, window_bounds = array<i64: 8, 128>}]} {
    %c0 = arith.constant 0 : index
    %c0_0 = arith.constant 0 : index
    %0 = vector.load %arg1[%c0, %c0_0] : memref<128x16xbf16, #tpu.memory_space<vmem>>, vector<128x16xbf16>
    %c0_1 = arith.constant 0 : index
    %c0_2 = arith.constant 0 : index
    %1 = vector.load %arg2[%c0_1, %c0_2] : memref<16x128xbf16, #tpu.memory_space<vmem>>, vector<16x128xbf16>
    %cst = arith.constant dense<0.000000e+00> : vector<128x128xf32>
    %2 = tpu.matmul %0, %1, %cst {dimension_numbers = #tpu.dot_dimension_numbers<[1], [0], [0], [1], [0, 0, 1, 1], [], []>} : vector<128x16xbf16>, vector<16x128xbf16>, vector<128x128xf32> -> vector<128x128xf32>
    %c0_3 = arith.constant 0 : index
    %c0_4 = arith.constant 0 : index
    %3 = vector.load %arg3[%c0_3, %c0_4] : memref<1x128xf32, #tpu.memory_space<vmem>>, vector<1x128xf32>
    %4 = vector.broadcast %3 : vector<1x128xf32> to vector<128x128xf32>
    %5 = arith.addf %2, %4 : vector<128x128xf32>
    %c0_5 = arith.constant 0 : index
    %c0_6 = arith.constant 0 : index
    %c0_7 = arith.constant 0 : index
    %6 = vector.load %arg4[%c0_5, %c0_6, %c0_7] : memref<3x1x128xf32, #tpu.memory_space<vmem>>, vector<1x1x128xf32>
    %7 = vector.shape_cast %6 : vector<1x1x128xf32> to vector<1x128xf32>
    %8 = vector.broadcast %7 : vector<1x128xf32> to vector<128x128xf32>
    %9 = arith.mulf %5, %8 : vector<128x128xf32>
    %c0_8 = arith.constant 0 : index
    %c0_9 = arith.constant 0 : index
    %c0_10 = arith.constant 0 : index
    %10 = vector.load %arg5[%c0_8, %c0_9, %c0_10] : memref<3x1x128xf32, #tpu.memory_space<vmem>>, vector<1x1x128xf32>
    %11 = vector.shape_cast %10 : vector<1x1x128xf32> to vector<1x128xf32>
    %12 = vector.broadcast %11 : vector<1x128xf32> to vector<128x128xf32>
    %13 = arith.addf %9, %12 : vector<128x128xf32>
    %14 = arith.truncf %13 : vector<128x128xf32> to vector<128x128xbf16>
    %c0_11 = arith.constant 0 : index
    %c0_12 = arith.constant 0 : index
    %c0_13 = arith.constant 0 : index
    %15 = vector.load %arg6[%c0_11, %c0_12, %c0_13] : memref<3x128x128xbf16, #tpu.memory_space<vmem>>, vector<1x128x128xbf16>
    %16 = vector.shape_cast %15 : vector<1x128x128xbf16> to vector<128x128xbf16>
    %cst_14 = arith.constant dense<0.000000e+00> : vector<128x128xf32>
    %17 = tpu.matmul %14, %16, %cst_14 {dimension_numbers = #tpu.dot_dimension_numbers<[1], [0], [0], [1], [0, 0, 1, 1], [], []>} : vector<128x128xbf16>, vector<128x128xbf16>, vector<128x128xf32> -> vector<128x128xf32>
    %c0_15 = arith.constant 0 : index
    %c0_16 = arith.constant 0 : index
    %c0_17 = arith.constant 0 : index
    %18 = vector.load %arg7[%c0_15, %c0_16, %c0_17] : memref<3x1x128xf32, #tpu.memory_space<vmem>>, vector<1x1x128xf32>
    %19 = vector.shape_cast %18 : vector<1x1x128xf32> to vector<1x128xf32>
    %20 = vector.broadcast %19 : vector<1x128xf32> to vector<128x128xf32>
    %21 = arith.addf %17, %20 : vector<128x128xf32>
    %cst_18 = arith.constant 0.000000e+00 : f32
    %22 = vector.broadcast %cst_18 : f32 to vector<128x128xf32>
    %23 = arith.maximumf %21, %22 : vector<128x128xf32>
    %24 = arith.addf %23, %13 : vector<128x128xf32>
    %c1 = arith.constant 1 : index
    %c0_19 = arith.constant 0 : index
    %c0_20 = arith.constant 0 : index
    %25 = vector.load %arg4[%c1, %c0_19, %c0_20] : memref<3x1x128xf32, #tpu.memory_space<vmem>>, vector<1x1x128xf32>
    %26 = vector.shape_cast %25 : vector<1x1x128xf32> to vector<1x128xf32>
    %27 = vector.broadcast %26 : vector<1x128xf32> to vector<128x128xf32>
    %28 = arith.mulf %24, %27 : vector<128x128xf32>
    %c1_21 = arith.constant 1 : index
    %c0_22 = arith.constant 0 : index
    %c0_23 = arith.constant 0 : index
    %29 = vector.load %arg5[%c1_21, %c0_22, %c0_23] : memref<3x1x128xf32, #tpu.memory_space<vmem>>, vector<1x1x128xf32>
    %30 = vector.shape_cast %29 : vector<1x1x128xf32> to vector<1x128xf32>
    %31 = vector.broadcast %30 : vector<1x128xf32> to vector<128x128xf32>
    %32 = arith.addf %28, %31 : vector<128x128xf32>
    %33 = arith.truncf %32 : vector<128x128xf32> to vector<128x128xbf16>
    %c1_24 = arith.constant 1 : index
    %c0_25 = arith.constant 0 : index
    %c0_26 = arith.constant 0 : index
    %34 = vector.load %arg6[%c1_24, %c0_25, %c0_26] : memref<3x128x128xbf16, #tpu.memory_space<vmem>>, vector<1x128x128xbf16>
    %35 = vector.shape_cast %34 : vector<1x128x128xbf16> to vector<128x128xbf16>
    %cst_27 = arith.constant dense<0.000000e+00> : vector<128x128xf32>
    %36 = tpu.matmul %33, %35, %cst_27 {dimension_numbers = #tpu.dot_dimension_numbers<[1], [0], [0], [1], [0, 0, 1, 1], [], []>} : vector<128x128xbf16>, vector<128x128xbf16>, vector<128x128xf32> -> vector<128x128xf32>
    %c1_28 = arith.constant 1 : index
    %c0_29 = arith.constant 0 : index
    %c0_30 = arith.constant 0 : index
    %37 = vector.load %arg7[%c1_28, %c0_29, %c0_30] : memref<3x1x128xf32, #tpu.memory_space<vmem>>, vector<1x1x128xf32>
    %38 = vector.shape_cast %37 : vector<1x1x128xf32> to vector<1x128xf32>
    %39 = vector.broadcast %38 : vector<1x128xf32> to vector<128x128xf32>
    %40 = arith.addf %36, %39 : vector<128x128xf32>
    %cst_31 = arith.constant 0.000000e+00 : f32
    %41 = vector.broadcast %cst_31 : f32 to vector<128x128xf32>
    %42 = arith.maximumf %40, %41 : vector<128x128xf32>
    %43 = arith.addf %42, %32 : vector<128x128xf32>
    %c2 = arith.constant 2 : index
    %c0_32 = arith.constant 0 : index
    %c0_33 = arith.constant 0 : index
    %44 = vector.load %arg4[%c2, %c0_32, %c0_33] : memref<3x1x128xf32, #tpu.memory_space<vmem>>, vector<1x1x128xf32>
    %45 = vector.shape_cast %44 : vector<1x1x128xf32> to vector<1x128xf32>
    %46 = vector.broadcast %45 : vector<1x128xf32> to vector<128x128xf32>
    %47 = arith.mulf %43, %46 : vector<128x128xf32>
    %c2_34 = arith.constant 2 : index
    %c0_35 = arith.constant 0 : index
    %c0_36 = arith.constant 0 : index
    %48 = vector.load %arg5[%c2_34, %c0_35, %c0_36] : memref<3x1x128xf32, #tpu.memory_space<vmem>>, vector<1x1x128xf32>
    %49 = vector.shape_cast %48 : vector<1x1x128xf32> to vector<1x128xf32>
    %50 = vector.broadcast %49 : vector<1x128xf32> to vector<128x128xf32>
    %51 = arith.addf %47, %50 : vector<128x128xf32>
    %52 = arith.truncf %51 : vector<128x128xf32> to vector<128x128xbf16>
    %c2_37 = arith.constant 2 : index
    %c0_38 = arith.constant 0 : index
    %c0_39 = arith.constant 0 : index
    %53 = vector.load %arg6[%c2_37, %c0_38, %c0_39] : memref<3x128x128xbf16, #tpu.memory_space<vmem>>, vector<1x128x128xbf16>
    %54 = vector.shape_cast %53 : vector<1x128x128xbf16> to vector<128x128xbf16>
    %cst_40 = arith.constant dense<0.000000e+00> : vector<128x128xf32>
    %55 = tpu.matmul %52, %54, %cst_40 {dimension_numbers = #tpu.dot_dimension_numbers<[1], [0], [0], [1], [0, 0, 1, 1], [], []>} : vector<128x128xbf16>, vector<128x128xbf16>, vector<128x128xf32> -> vector<128x128xf32>
    %c2_41 = arith.constant 2 : index
    %c0_42 = arith.constant 0 : index
    %c0_43 = arith.constant 0 : index
    %56 = vector.load %arg7[%c2_41, %c0_42, %c0_43] : memref<3x1x128xf32, #tpu.memory_space<vmem>>, vector<1x1x128xf32>
    %57 = vector.shape_cast %56 : vector<1x1x128xf32> to vector<1x128xf32>
    %58 = vector.broadcast %57 : vector<1x128xf32> to vector<128x128xf32>
    %59 = arith.addf %55, %58 : vector<128x128xf32>
    %cst_44 = arith.constant 0.000000e+00 : f32
    %60 = vector.broadcast %cst_44 : f32 to vector<128x128xf32>
    %61 = arith.maximumf %59, %60 : vector<128x128xf32>
    %62 = arith.addf %61, %51 : vector<128x128xf32>
    %c0_45 = arith.constant 0 : index
    %c0_46 = arith.constant 0 : index
    %63 = vector.load %arg8[%c0_45, %c0_46] : memref<8x128xf32, #tpu.memory_space<vmem>>, vector<8x128xf32>
    %cst_47 = arith.constant dense<0.000000e+00> : vector<8x128xf32>
    %64 = tpu.matmul %63, %62, %cst_47 {dimension_numbers = #tpu.dot_dimension_numbers<[1], [1], [0], [0], [0, 0, 1, 0], [], []>} : vector<8x128xf32>, vector<128x128xf32>, vector<8x128xf32> -> vector<8x128xf32>
    %c0_48 = arith.constant 0 : index
    %c0_49 = arith.constant 0 : index
    %65 = vector.load %arg9[%c0_48, %c0_49] : memref<8x1xf32, #tpu.memory_space<vmem>>, vector<8x1xf32>
    %66 = vector.broadcast %65 : vector<8x1xf32> to vector<8x128xf32>
    %67 = arith.addf %64, %66 : vector<8x128xf32>
    %c0_50 = arith.constant 0 : index
    %c0_51 = arith.constant 0 : index
    %68 = vector.load %arg10[%c0_50, %c0_51] : memref<8x128xf32, #tpu.memory_space<vmem>>, vector<8x128xf32>
    tpu.vector_store %arg10[%c0_50, %c0_51], %67 {strides = array<i32>} : memref<8x128xf32, #tpu.memory_space<vmem>>, vector<8x128xf32>,
    return
  }
  func.func @transform_0(%arg0: i32) -> (i32, i32) {
    %c0_i32 = arith.constant 0 : i32
    %c0_i32_0 = arith.constant 0 : i32
    return %arg0, %c0_i32 : i32, i32
  }
  func.func @transform_1(%arg0: i32) -> (i32, i32) {
    %c0_i32 = arith.constant 0 : i32
    %c0_i32_0 = arith.constant 0 : i32
    %c0_i32_1 = arith.constant 0 : i32
    return %c0_i32, %c0_i32_0 : i32, i32
  }
  func.func @transform_2(%arg0: i32) -> (i32, i32) {
    %c0_i32 = arith.constant 0 : i32
    %c0_i32_0 = arith.constant 0 : i32
    %c0_i32_1 = arith.constant 0 : i32
    return %c0_i32, %c0_i32_0 : i32, i32
  }
  func.func @transform_3(%arg0: i32) -> (i32, i32, i32) {
    %c0_i32 = arith.constant 0 : i32
    %c0_i32_0 = arith.constant 0 : i32
    %c0_i32_1 = arith.constant 0 : i32
    %c0_i32_2 = arith.constant 0 : i32
    return %c0_i32, %c0_i32_0, %c0_i32_1 : i32, i32, i32
  }
  func.func @transform_4(%arg0: i32) -> (i32, i32, i32) {
    %c0_i32 = arith.constant 0 : i32
    %c0_i32_0 = arith.constant 0 : i32
    %c0_i32_1 = arith.constant 0 : i32
    %c0_i32_2 = arith.constant 0 : i32
    return %c0_i32, %c0_i32_0, %c0_i32_1 : i32, i32, i32
  }
  func.func @transform_5(%arg0: i32) -> (i32, i32, i32) {
    %c0_i32 = arith.constant 0 : i32
    %c0_i32_0 = arith.constant 0 : i32
    %c0_i32_1 = arith.constant 0 : i32
    %c0_i32_2 = arith.constant 0 : i32
    return %c0_i32, %c0_i32_0, %c0_i32_1 : i32, i32, i32
  }
  func.func @transform_6(%arg0: i32) -> (i32, i32, i32) {
    %c0_i32 = arith.constant 0 : i32
    %c0_i32_0 = arith.constant 0 : i32
    %c0_i32_1 = arith.constant 0 : i32
    %c0_i32_2 = arith.constant 0 : i32
    return %c0_i32, %c0_i32_0, %c0_i32_1 : i32, i32, i32
  }
  func.func @transform_7(%arg0: i32) -> (i32, i32) {
    %c0_i32 = arith.constant 0 : i32
    %c0_i32_0 = arith.constant 0 : i32
    %c0_i32_1 = arith.constant 0 : i32
    return %c0_i32, %c0_i32_0 : i32, i32
  }
  func.func @transform_8(%arg0: i32) -> (i32, i32) {
    %c0_i32 = arith.constant 0 : i32
    %c0_i32_0 = arith.constant 0 : i32
    %c0_i32_1 = arith.constant 0 : i32
    return %c0_i32, %c0_i32_0 : i32, i32
  }
  func.func @transform_9(%arg0: i32) -> (i32, i32) {
    %c0_i32 = arith.constant 0 : i32
    %c0_i32_0 = arith.constant 0 : i32
    return %c0_i32, %arg0 : i32, i32
  }
}

</mosaic_0001>

<llo_original>
// kernel: tpu_custom_call.1
$region0: #{tpu_custom_call.1}
  #allocation0 [shape = 'u32[]', space=smem, size = 0x4, offset = 0x4, fixed_abs, tag = 'smem constant byte address 0x4 - core index']
  #allocation1 [shape = 'u32[144,128]{1,0:T(1,128)}', space=vmem, size = 0x12000, scoped, tag = 'internal scratch']
  %s0 = inlined_call_operand.vmem [shape: bf16[128,16], index: 0, kind: input, shape index: {}]
  %s1 = inlined_call_operand.vmem [shape: bf16[16,128], index: 1, kind: input, shape index: {}]
  %s2 = inlined_call_operand.vmem [shape: f32[1,128], index: 2, kind: input, shape index: {}]
  %s3 = inlined_call_operand.vmem [shape: f32[3,1,128], index: 3, kind: input, shape index: {}]
  %s4 = inlined_call_operand.vmem [shape: f32[3,1,128], index: 4, kind: input, shape index: {}]
  %s5 = inlined_call_operand.hbm [shape: bf16[3,128,128], index: 5, kind: input, shape index: {}]
  %s6 = inlined_call_operand.vmem [shape: f32[3,1,128], index: 6, kind: input, shape index: {}]
  %s7 = inlined_call_operand.vmem [shape: f32[8,128], index: 7, kind: input, shape index: {}]
  %s8 = inlined_call_operand.vmem [shape: f32[8,1], index: 8, kind: input, shape index: {}]
  %s9 = inlined_call_operand.hbm [shape: f32[8,128], index: 9, kind: output, shape index: {}]
  %s10 = sld [smem:[#allocation0]]
  $region50: #{tpu_custom_call.1} parent=0
    _
  %s12 = ssub.s32 1, %s10
  %s13 = scalar_select 0, %s12, %s10
  $region1: #{tpu_custom_call.1} parent=0
    #allocation2 [shape = 'u8[98304]{0}', space=vmem, size = 0x18000, scoped, tag = 'input window, operand 5, single buffered']
    #allocation3 [shape = 's32[1]{0}', space=sflag, size = 0x4, scoped, tag = 'scoped memory for tpu_custom_call.1']
    #allocation4 [shape = 's32[1]{0}', space=sflag, size = 0x4, scoped, tag = 'scoped memory for tpu_custom_call.1']
    #allocation5 [shape = 'u8[4096]{0}', space=vmem, size = 0x1000, scoped, tag = 'output window, operand 0, single buffered']
    %14 = vsyncpa [#allocation3], 0
    %15 = vsyncpa [#allocation4], 0
    // Predicated region
    $region2: #{tpu_custom_call.1} parent=1 // pred_check
      _
    $region3: #{tpu_custom_call.1} parent=1 // pred_check_branch
      %17 = sbr.rel (0) target = $region5
    $region4: #{tpu_custom_call.1} parent=1 // pred_region
      _
    $region5: #{tpu_custom_call.1} parent=1 // pred_fallthru
      _
    // Predicated region
    $region6: #{tpu_custom_call.1} parent=1 // pred_check
      _
    $region7: #{tpu_custom_call.1} parent=1 // pred_check_branch
      %19 = sbr.rel (0) target = $region9
    $region8: #{tpu_custom_call.1} parent=1 // pred_region
      _
    $region9: #{tpu_custom_call.1} parent=1 // pred_fallthru
      _
    // Predicated region
    $region10: #{tpu_custom_call.1} parent=1 // pred_check
      _
    $region11: #{tpu_custom_call.1} parent=1 // pred_check_branch
      %21 = sbr.rel (0) target = $region13
    $region12: #{tpu_custom_call.1} parent=1 // pred_region
      _
    $region13: #{tpu_custom_call.1} parent=1 // pred_fallthru
      _
    // Predicated region
    $region14: #{tpu_custom_call.1} parent=1 // pred_check
      _
    $region15: #{tpu_custom_call.1} parent=1 // pred_check_branch
      %23 = sbr.rel (0) target = $region17
    $region16: #{tpu_custom_call.1} parent=1 // pred_region
      _
    $region17: #{tpu_custom_call.1} parent=1 // pred_fallthru
      _
    // Predicated region
    $region18: #{tpu_custom_call.1} parent=1 // pred_check
      _
    $region19: #{tpu_custom_call.1} parent=1 // pred_check_branch
      %25 = sbr.rel (0) target = $region21
    $region20: #{tpu_custom_call.1} parent=1 // pred_region
      _
    $region21: #{tpu_custom_call.1} parent=1 // pred_fallthru
      _
    // Predicated region
    $region22: #{tpu_custom_call.1} parent=1 // pred_check
      _
    $region23: #{tpu_custom_call.1} parent=1 // pred_check_branch
      %27 = sbr.rel (0) target = $region25
    $region24: #{tpu_custom_call.1} parent=1 // pred_region
      %s29 = ssub.s32 3072, 3072
      %30 = vsyncadd [#allocation3], %s29
      %s31 = sshll.u32 [#allocation2], 4
      %s32 = int_to_ptr.vmem [resolvable:$true] %s31
      %37 = dma.hbm_to_vmem [thread:$0]  %s5, 3072, %s32, [#allocation3], 64, 64, 4
    $region25: #{tpu_custom_call.1} parent=1 // pred_fallthru
      _
    // Predicated region
    $region26: #{tpu_custom_call.1} parent=1 // pred_check
      _
    $region27: #{tpu_custom_call.1} parent=1 // pred_check_branch
      %39 = sbr.rel (0) target = $region29
    $region28: #{tpu_custom_call.1} parent=1 // pred_region
      _
    $region29: #{tpu_custom_call.1} parent=1 // pred_fallthru
      _
    // Predicated region
    $region30: #{tpu_custom_call.1} parent=1 // pred_check
      _
    $region31: #{tpu_custom_call.1} parent=1 // pred_check_branch
      %41 = sbr.rel (0) target = $region33
    $region32: #{tpu_custom_call.1} parent=1 // pred_region
      _
    $region33: #{tpu_custom_call.1} parent=1 // pred_fallthru
      _
    // Predicated region
    $region34: #{tpu_custom_call.1} parent=1 // pred_check
      _
    $region35: #{tpu_custom_call.1} parent=1 // pred_check_branch
      %43 = sbr.rel (0) target = $region37
    $region36: #{tpu_custom_call.1} parent=1 // pred_region
      _
    $region37: #{tpu_custom_call.1} parent=1 // pred_fallthru
      _
    // Predicated region
    $region38: #{tpu_custom_call.1} parent=1 // pred_check
      _
    $region39: #{tpu_custom_call.1} parent=1 // pred_check_branch
      %45 = sbr.rel (0) target = $region41
    $region40: #{tpu_custom_call.1} parent=1 // pred_region
      %46 = dma.done [#allocation3], 3072
    $region41: #{tpu_custom_call.1} parent=1 // pred_fallthru
      _
    %v48 = vld [vmem:[%s0] sm:$0xf]
    %v49 = vld [vmem:[%s0 + $0x4] sm:$0xf]
    %v50 = vld [vmem:[%s0 + $0x8] sm:$0xf]
    %v51 = vld [vmem:[%s0 + $0xc] sm:$0xf]
    %v52 = vld [vmem:[%s0 + $0x10] sm:$0xf]
    %v53 = vld [vmem:[%s0 + $0x14] sm:$0xf]
    %v54 = vld [vmem:[%s0 + $0x18] sm:$0xf]
    %v55 = vld [vmem:[%s0 + $0x1c] sm:$0xf]
    %v56 = vld [vmem:[%s0 + $0x20] sm:$0xf]
    %v57 = vld [vmem:[%s0 + $0x24] sm:$0xf]
    %v58 = vld [vmem:[%s0 + $0x28] sm:$0xf]
    %v59 = vld [vmem:[%s0 + $0x2c] sm:$0xf]
    %v60 = vld [vmem:[%s0 + $0x30] sm:$0xf]
    %v61 = vld [vmem:[%s0 + $0x34] sm:$0xf]
    %v62 = vld [vmem:[%s0 + $0x38] sm:$0xf]
    %v63 = vld [vmem:[%s0 + $0x3c] sm:$0xf]
    %v64 = vld [vmem:[%s1] sm:$0xf]
    %v65 = vld [vmem:[%s1 + $0x4] sm:$0xf]
    %v66 = vld [vmem:[%s2] sm:$0x1]
    %v68 = vlaneseq
    %v69 = vshrl.u32 %v68, 7
    %v70 = vsub.s32 0, %v69
    %v71 = vrot.slane %v66, %v70
    %v89 = vunpack.c.l.b16 %v48
    %v90 = vunpack.c.l.b16 %v49
    %v91 = vunpack.c.l.b16 %v50
    %v92 = vunpack.c.l.b16 %v51
    %v93 = vunpack.c.l.b16 %v52
    %v94 = vunpack.c.l.b16 %v53
    %v95 = vunpack.c.l.b16 %v54
    %v96 = vunpack.c.l.b16 %v55
    %v97 = vunpack.c.l.b16 %v56
    %v98 = vunpack.c.l.b16 %v57
    %v99 = vunpack.c.l.b16 %v58
    %v100 = vunpack.c.l.b16 %v59
    %v101 = vunpack.c.l.b16 %v60
    %v102 = vunpack.c.l.b16 %v61
    %v103 = vunpack.c.l.b16 %v62
    %v104 = vunpack.c.l.b16 %v63
    %v105 = vpack.c.b16 %v90, %v89
    %v106 = vpack.c.b16 %v92, %v91
    %v107 = vpack.c.b16 %v94, %v93
    %v108 = vpack.c.b16 %v96, %v95
    %v109 = vpack.c.b16 %v98, %v97
    %v110 = vpack.c.b16 %v100, %v99
    %v111 = vpack.c.b16 %v102, %v101
    %v112 = vpack.c.b16 %v104, %v103
    %v115 = vunpack.c.l.b16 %v64
    %v116 = vunpack.c.l.b16 %v65
    %v117 = vpack.c.b16 %v116, %v115
    %vm119 = vcmask 130048
    %v121 = vsel %vm119, %v105, 0
    %v124 = vsel %vm119, %v106, 0
    %v127 = vsel %vm119, %v107, 0
    %v130 = vsel %vm119, %v108, 0
    %v133 = vsel %vm119, %v109, 0
    %v136 = vsel %vm119, %v110, 0
    %v139 = vsel %vm119, %v111, 0
    %v142 = vsel %vm119, %v112, 0
    %144 = vmatprep.subr.bf16.mxu0 0
    %145 = vmatpush1.bf16.msra.mxu0 0
    %146 = vmatprep.subr.bf16.mxu0 0
    %147 = vmatpush1.bf16.msra.mxu0 0
    %148 = vmatprep.subr.bf16.mxu0 0
    %149 = vmatpush1.bf16.msra.mxu0 0
    %150 = vmatprep.subr.bf16.mxu0 0
    %151 = vmatpush1.bf16.msra.mxu0 0
    %152 = vmatprep.subr.bf16.mxu0 0
    %153 = vmatpush1.bf16.msra.mxu0 0
    %154 = vmatprep.subr.bf16.mxu0 0
    %155 = vmatpush1.bf16.msra.mxu0 0
    %156 = vmatprep.subr.bf16.mxu0 0
    %157 = vmatpush1.bf16.msra.mxu0 0
    %158 = vmatprep.subr.bf16.mxu0 0
    %159 = vmatpush1.bf16.msra.mxu0 %v117
    %160 = vmatprep.subr.bf16.mxu0 0
    %161 = vmatpush2.bf16.msra.mxu0 0
    %162 = vmatprep.subr.bf16.mxu0 0
    %163 = vmatpush2.bf16.msra.mxu0 0
    %164 = vmatprep.subr.bf16.mxu0 0
    %165 = vmatpush2.bf16.msra.mxu0 0
    %166 = vmatprep.subr.bf16.mxu0 0
    %167 = vmatpush2.bf16.msra.mxu0 0
    %168 = vmatprep.subr.bf16.mxu0 0
    %169 = vmatpush2.bf16.msra.mxu0 0
    %170 = vmatprep.subr.bf16.mxu0 0
    %171 = vmatpush2.bf16.msra.mxu0 0
    %172 = vmatprep.subr.bf16.mxu0 0
    %173 = vmatpush2.bf16.msra.mxu0 0
    %174 = vmatprep.subr.bf16.mxu0 0
    %175 = vmatpush2.bf16.msra.mxu0 0
    %176 = vmatprep.mubr.bf16.mxu0 0
    %177 = vmatmul.mubr.bf16.gmra.mxu0 %v121
    %v178 = vpop.f32.mrf.mxu0
    %v179 = vadd.f32 %v71, %v178
    %v180 = vpop.f32.mrf.mxu0
    %v181 = vpop.f32.mrf.mxu0
    %v182 = vadd.f32 %v71, %v181
    %v183 = vpop.f32.mrf.mxu0
    %184 = vmatprep.mubr.bf16.mxu0 0
    %185 = vmatmul.mubr.bf16.gmra.mxu0 %v124
    %v186 = vpop.f32.mrf.mxu0
    %v187 = vadd.f32 %v71, %v186
    %v188 = vpop.f32.mrf.mxu0
    %v189 = vpop.f32.mrf.mxu0
    %v190 = vadd.f32 %v71, %v189
    %v191 = vpop.f32.mrf.mxu0
    %192 = vmatprep.mubr.bf16.mxu0 0
    %193 = vmatmul.mubr.bf16.gmra.mxu0 %v127
    %v194 = vpop.f32.mrf.mxu0
    %v195 = vadd.f32 %v71, %v194
    %v196 = vpop.f32.mrf.mxu0
    %v197 = vpop.f32.mrf.mxu0
    %v198 = vadd.f32 %v71, %v197
    %v199 = vpop.f32.mrf.mxu0
    %200 = vmatprep.mubr.bf16.mxu0 0
    %201 = vmatmul.mubr.bf16.gmra.mxu0 %v130
    %v202 = vpop.f32.mrf.mxu0
    %v203 = vadd.f32 %v71, %v202
    %v204 = vpop.f32.mrf.mxu0
    %v205 = vpop.f32.mrf.mxu0
    %v206 = vadd.f32 %v71, %v205
    %v207 = vpop.f32.mrf.mxu0
    %208 = vmatprep.mubr.bf16.mxu0 0
    %209 = vmatmul.mubr.bf16.gmra.mxu0 %v133
    %v210 = vpop.f32.mrf.mxu0
    %v211 = vadd.f32 %v71, %v210
    %v212 = vpop.f32.mrf.mxu0
    %v213 = vpop.f32.mrf.mxu0
    %v214 = vadd.f32 %v71, %v213
    %v215 = vpop.f32.mrf.mxu0
    %216 = vmatprep.mubr.bf16.mxu0 0
    %217 = vmatmul.mubr.bf16.gmra.mxu0 %v136
    %v218 = vpop.f32.mrf.mxu0
    %v219 = vadd.f32 %v71, %v218
    %v220 = vpop.f32.mrf.mxu0
    %v221 = vpop.f32.mrf.mxu0
    %v222 = vadd.f32 %v71, %v221
    %v223 = vpop.f32.mrf.mxu0
    %224 = vmatprep.mubr.bf16.mxu0 0
    %225 = vmatmul.mubr.bf16.gmra.mxu0 %v139
    %v226 = vpop.f32.mrf.mxu0
    %v227 = vadd.f32 %v71, %v226
    %v228 = vpop.f32.mrf.mxu0
    %v229 = vpop.f32.mrf.mxu0
    %v230 = vadd.f32 %v71, %v229
    %v231 = vpop.f32.mrf.mxu0
    %232 = vmatprep.mubr.bf16.mxu0 0
    %233 = vmatmul.mubr.bf16.gmra.mxu0 %v142
    %v234 = vpop.f32.mrf.mxu0
    %v235 = vadd.f32 %v71, %v234
    %v236 = vpop.f32.mrf.mxu0
    %v237 = vpop.f32.mrf.mxu0
    %v238 = vadd.f32 %v71, %v237
    %v239 = vpop.f32.mrf.mxu0
    %240 = vdwg.mxu0
    %v241 = vld [vmem:[%s3] sm:$0x1]
    %v243 = vlaneseq
    %v244 = vshrl.u32 %v243, 7
    %v245 = vsub.s32 0, %v244
    %v246 = vrot.slane %v241, %v245
    %v248 = vmul.f32 %v179, %v246
    %v249 = vmul.f32 %v182, %v246
    %v250 = vmul.f32 %v187, %v246
    %v251 = vmul.f32 %v190, %v246
    %v252 = vmul.f32 %v195, %v246
    %v253 = vmul.f32 %v198, %v246
    %v254 = vmul.f32 %v203, %v246
    %v255 = vmul.f32 %v206, %v246
    %v256 = vmul.f32 %v211, %v246
    %v257 = vmul.f32 %v214, %v246
    %v258 = vmul.f32 %v219, %v246
    %v259 = vmul.f32 %v222, %v246
    %v260 = vmul.f32 %v227, %v246
    %v261 = vmul.f32 %v230, %v246
    %v262 = vmul.f32 %v235, %v246
    %v263 = vmul.f32 %v238, %v246
    %v264 = vld [vmem:[%s4] sm:$0x1]
    %v266 = vlaneseq
    %v267 = vshrl.u32 %v266, 7
    %v268 = vsub.s32 0, %v267
    %v269 = vrot.slane %v264, %v268
    %v271 = vadd.f32 %v248, %v269
    %v272 = vadd.f32 %v249, %v269
    %v273 = vadd.f32 %v250, %v269
    %v274 = vadd.f32 %v251, %v269
    %v275 = vadd.f32 %v252, %v269
    %v276 = vadd.f32 %v253, %v269
    %v277 = vadd.f32 %v254, %v269
    %v278 = vadd.f32 %v255, %v269
    %v279 = vadd.f32 %v256, %v269
    %v280 = vadd.f32 %v257, %v269
    %v281 = vadd.f32 %v258, %v269
    %v282 = vadd.f32 %v259, %v269
    %v283 = vadd.f32 %v260, %v269
    %v284 = vadd.f32 %v261, %v269
    %v285 = vadd.f32 %v262, %v269
    %v286 = vadd.f32 %v263, %v269
    %v287 = vpack.c.bf16 %v272, %v271
    %v288 = vpack.c.bf16 %v274, %v273
    %v289 = vpack.c.bf16 %v276, %v275
    %v290 = vpack.c.bf16 %v278, %v277
    %v291 = vpack.c.bf16 %v280, %v279
    %v292 = vpack.c.bf16 %v282, %v281
    %v293 = vpack.c.bf16 %v284, %v283
    %v294 = vpack.c.bf16 %v286, %v285
    %v295 = vld [vmem:[#allocation2] sm:$0xf]
    %v296 = vld [vmem:[#allocation2 + $0x4] sm:$0xf]
    %v297 = vld [vmem:[#allocation2 + $0x8] sm:$0xf]
    %v298 = vld [vmem:[#allocation2 + $0xc] sm:$0xf]
    %v299 = vld [vmem:[#allocation2 + $0x10] sm:$0xf]
    %v300 = vld [vmem:[#allocation2 + $0x14] sm:$0xf]
    %v301 = vld [vmem:[#allocation2 + $0x18] sm:$0xf]
    %v302 = vld [vmem:[#allocation2 + $0x1c] sm:$0xf]
    %v303 = vld [vmem:[#allocation2 + $0x20] sm:$0xf]
    %v304 = vld [vmem:[#allocation2 + $0x24] sm:$0xf]
    %v305 = vld [vmem:[#allocation2 + $0x28] sm:$0xf]
    %v306 = vld [vmem:[#allocation2 + $0x2c] sm:$0xf]
    %v307 = vld [vmem:[#allocation2 + $0x30] sm:$0xf]
    %v308 = vld [vmem:[#allocation2 + $0x34] sm:$0xf]
    %v309 = vld [vmem:[#allocation2 + $0x38] sm:$0xf]
    %v310 = vld [vmem:[#allocation2 + $0x3c] sm:$0xf]
    %v311 = vld [vmem:[%s6] sm:$0x1]
    %v313 = vlaneseq
    %v314 = vshrl.u32 %v313, 7
    %v315 = vsub.s32 0, %v314
    %v316 = vrot.slane %v311, %v315
    %v334 = vunpack.c.l.b16 %v295
    %v335 = vunpack.c.l.b16 %v296
    %v336 = vunpack.c.l.b16 %v297
    %v337 = vunpack.c.l.b16 %v298
    %v338 = vunpack.c.l.b16 %v299
    %v339 = vunpack.c.l.b16 %v300
    %v340 = vunpack.c.l.b16 %v301
    %v341 = vunpack.c.l.b16 %v302
    %v342 = vunpack.c.l.b16 %v303
    %v343 = vunpack.c.l.b16 %v304
    %v344 = vunpack.c.l.b16 %v305
    %v345 = vunpack.c.l.b16 %v306
    %v346 = vunpack.c.l.b16 %v307
    %v347 = vunpack.c.l.b16 %v308
    %v348 = vunpack.c.l.b16 %v309
    %v349 = vunpack.c.l.b16 %v310
    %v350 = vpack.c.b16 %v335, %v334
    %v351 = vpack.c.b16 %v337, %v336
    %v352 = vpack.c.b16 %v339, %v338
    %v353 = vpack.c.b16 %v341, %v340
    %v354 = vpack.c.b16 %v343, %v342
    %v355 = vpack.c.b16 %v345, %v344
    %v356 = vpack.c.b16 %v347, %v346
    %v357 = vpack.c.b16 %v349, %v348
    %366 = vmatprep.subr.bf16.mxu0 0
    %367 = vmatpush1.bf16.msra.mxu0 %v357
    %368 = vmatprep.subr.bf16.mxu0 0
    %369 = vmatpush1.bf16.msra.mxu0 %v356
    %370 = vmatprep.subr.bf16.mxu0 0
    %371 = vmatpush1.bf16.msra.mxu0 %v355
    %372 = vmatprep.subr.bf16.mxu0 0
    %373 = vmatpush1.bf16.msra.mxu0 %v354
    %374 = vmatprep.subr.bf16.mxu0 0
    %375 = vmatpush1.bf16.msra.mxu0 %v353
    %376 = vmatprep.subr.bf16.mxu0 0
    %377 = vmatpush1.bf16.msra.mxu0 %v352
    %378 = vmatprep.subr.bf16.mxu0 0
    %379 = vmatpush1.bf16.msra.mxu0 %v351
    %380 = vmatprep.subr.bf16.mxu0 0
    %381 = vmatpush1.bf16.msra.mxu0 %v350
    %382 = vmatprep.subr.bf16.mxu0 0
    %383 = vmatpush2.bf16.msra.mxu0 0
    %384 = vmatprep.subr.bf16.mxu0 0
    %385 = vmatpush2.bf16.msra.mxu0 0
    %386 = vmatprep.subr.bf16.mxu0 0
    %387 = vmatpush2.bf16.msra.mxu0 0
    %388 = vmatprep.subr.bf16.mxu0 0
    %389 = vmatpush2.bf16.msra.mxu0 0
    %390 = vmatprep.subr.bf16.mxu0 0
    %391 = vmatpush2.bf16.msra.mxu0 0
    %392 = vmatprep.subr.bf16.mxu0 0
    %393 = vmatpush2.bf16.msra.mxu0 0
    %394 = vmatprep.subr.bf16.mxu0 0
    %395 = vmatpush2.bf16.msra.mxu0 0
    %396 = vmatprep.subr.bf16.mxu0 0
    %397 = vmatpush2.bf16.msra.mxu0 0
    %398 = vmatprep.mubr.bf16.mxu0 0
    %399 = vmatmul.mubr.bf16.gmra.mxu0 %v287
    %v400 = vpop.f32.mrf.mxu0
    %v401 = vadd.f32 %v316, %v400
    %v402 = vpop.f32.mrf.mxu0
    %v403 = vpop.f32.mrf.mxu0
    %v404 = vadd.f32 %v316, %v403
    %v405 = vpop.f32.mrf.mxu0
    %406 = vmatprep.mubr.bf16.mxu0 0
    %407 = vmatmul.mubr.bf16.gmra.mxu0 %v288
    %v408 = vpop.f32.mrf.mxu0
    %v409 = vadd.f32 %v316, %v408
    %v410 = vpop.f32.mrf.mxu0
    %v411 = vpop.f32.mrf.mxu0
    %v412 = vadd.f32 %v316, %v411
    %v413 = vpop.f32.mrf.mxu0
    %414 = vmatprep.mubr.bf16.mxu0 0
    %415 = vmatmul.mubr.bf16.gmra.mxu0 %v289
    %v416 = vpop.f32.mrf.mxu0
    %v417 = vadd.f32 %v316, %v416
    %v418 = vpop.f32.mrf.mxu0
    %v419 = vpop.f32.mrf.mxu0
    %v420 = vadd.f32 %v316, %v419
    %v421 = vpop.f32.mrf.mxu0
    %422 = vmatprep.mubr.bf16.mxu0 0
    %423 = vmatmul.mubr.bf16.gmra.mxu0 %v290
    %v424 = vpop.f32.mrf.mxu0
    %v425 = vadd.f32 %v316, %v424
    %v426 = vpop.f32.mrf.mxu0
    %v427 = vpop.f32.mrf.mxu0
    %v428 = vadd.f32 %v316, %v427
    %v429 = vpop.f32.mrf.mxu0
    %430 = vmatprep.mubr.bf16.mxu0 0
    %431 = vmatmul.mubr.bf16.gmra.mxu0 %v291
    %v432 = vpop.f32.mrf.mxu0
    %v433 = vadd.f32 %v316, %v432
    %v434 = vpop.f32.mrf.mxu0
    %v435 = vpop.f32.mrf.mxu0
    %v436 = vadd.f32 %v316, %v435
    %v437 = vpop.f32.mrf.mxu0
    %438 = vmatprep.mubr.bf16.mxu0 0
    %439 = vmatmul.mubr.bf16.gmra.mxu0 %v292
    %v440 = vpop.f32.mrf.mxu0
    %v441 = vadd.f32 %v316, %v440
    %v442 = vpop.f32.mrf.mxu0
    %v443 = vpop.f32.mrf.mxu0
    %v444 = vadd.f32 %v316, %v443
    %v445 = vpop.f32.mrf.mxu0
    %446 = vmatprep.mubr.bf16.mxu0 0
    %447 = vmatmul.mubr.bf16.gmra.mxu0 %v293
    %v448 = vpop.f32.mrf.mxu0
    %v449 = vadd.f32 %v316, %v448
    %v450 = vpop.f32.mrf.mxu0
    %v451 = vpop.f32.mrf.mxu0
    %v452 = vadd.f32 %v316, %v451
    %v453 = vpop.f32.mrf.mxu0
    %454 = vmatprep.mubr.bf16.mxu0 0
    %455 = vmatmul.mubr.bf16.gmra.mxu0 %v294
    %v456 = vpop.f32.mrf.mxu0
    %v457 = vadd.f32 %v316, %v456
    %v458 = vpop.f32.mrf.mxu0
    %v459 = vpop.f32.mrf.mxu0
    %v460 = vadd.f32 %v316, %v459
    %v461 = vpop.f32.mrf.mxu0
    %462 = vdwg.mxu0
    %v463 = vmax.f32 %v401, 0.0
    %v464 = vmax.f32 %v404, 0.0
    %v465 = vmax.f32 %v409, 0.0
    %v466 = vmax.f32 %v412, 0.0
    %v467 = vmax.f32 %v417, 0.0
    %v468 = vmax.f32 %v420, 0.0
    %v469 = vmax.f32 %v425, 0.0
    %v470 = vmax.f32 %v428, 0.0
    %v471 = vmax.f32 %v433, 0.0
    %v472 = vmax.f32 %v436, 0.0
    %v473 = vmax.f32 %v441, 0.0
    %v474 = vmax.f32 %v444, 0.0
    %v475 = vmax.f32 %v449, 0.0
    %v476 = vmax.f32 %v452, 0.0
    %v477 = vmax.f32 %v457, 0.0
    %v478 = vmax.f32 %v460, 0.0
    %v479 = vadd.f32 %v463, %v271
    %v480 = vadd.f32 %v464, %v272
    %v481 = vadd.f32 %v465, %v273
    %v482 = vadd.f32 %v466, %v274
    %v483 = vadd.f32 %v467, %v275
    %v484 = vadd.f32 %v468, %v276
    %v485 = vadd.f32 %v469, %v277
    %v486 = vadd.f32 %v470, %v278
    %v487 = vadd.f32 %v471, %v279
    %v488 = vadd.f32 %v472, %v280
    %v489 = vadd.f32 %v473, %v281
    %v490 = vadd.f32 %v474, %v282
    %v491 = vadd.f32 %v475, %v283
    %v492 = vadd.f32 %v476, %v284
    %v493 = vadd.f32 %v477, %v285
    %v494 = vadd.f32 %v478, %v286
    %s495 = scalar_lea.vmem %s3, 1
    %v496 = vld [vmem:[%s495] sm:$0x1]
    %v498 = vlaneseq
    %v499 = vshrl.u32 %v498, 7
    %v500 = vsub.s32 0, %v499
    %v501 = vrot.slane %v496, %v500
    %v503 = vmul.f32 %v479, %v501
    %v504 = vmul.f32 %v480, %v501
    %v505 = vmul.f32 %v481, %v501
    %v506 = vmul.f32 %v482, %v501
    %v507 = vmul.f32 %v483, %v501
    %v508 = vmul.f32 %v484, %v501
    %v509 = vmul.f32 %v485, %v501
    %v510 = vmul.f32 %v486, %v501
    %v511 = vmul.f32 %v487, %v501
    %v512 = vmul.f32 %v488, %v501
    %v513 = vmul.f32 %v489, %v501
    %v514 = vmul.f32 %v490, %v501
    %v515 = vmul.f32 %v491, %v501
    %v516 = vmul.f32 %v492, %v501
    %v517 = vmul.f32 %v493, %v501
    %v518 = vmul.f32 %v494, %v501
    %s519 = scalar_lea.vmem %s4, 1
    %v520 = vld [vmem:[%s519] sm:$0x1]
    %v522 = vlaneseq
    %v523 = vshrl.u32 %v522, 7
    %v524 = vsub.s32 0, %v523
    %v525 = vrot.slane %v520, %v524
    %v527 = vadd.f32 %v503, %v525
    %v528 = vadd.f32 %v504, %v525
    %v529 = vadd.f32 %v505, %v525
    %v530 = vadd.f32 %v506, %v525
    %v531 = vadd.f32 %v507, %v525
    %v532 = vadd.f32 %v508, %v525
    %v533 = vadd.f32 %v509, %v525
    %v534 = vadd.f32 %v510, %v525
    %v535 = vadd.f32 %v511, %v525
    %v536 = vadd.f32 %v512, %v525
    %v537 = vadd.f32 %v513, %v525
    %v538 = vadd.f32 %v514, %v525
    %v539 = vadd.f32 %v515, %v525
    %v540 = vadd.f32 %v516, %v525
    %v541 = vadd.f32 %v517, %v525
    %v542 = vadd.f32 %v518, %v525
    %v543 = vpack.c.bf16 %v528, %v527
    %v544 = vpack.c.bf16 %v530, %v529
    %v545 = vpack.c.bf16 %v532, %v531
    %v546 = vpack.c.bf16 %v534, %v533
    %v547 = vpack.c.bf16 %v536, %v535
    %v548 = vpack.c.bf16 %v538, %v537
    %v549 = vpack.c.bf16 %v540, %v539
    %v550 = vpack.c.bf16 %v542, %v541
    %s551 = scalar_lea.vmem [#allocation2], 64
    %v552 = vld [vmem:[%s551] sm:$0xf]
    %v553 = vld [vmem:[%s551 + $0x4] sm:$0xf]
    %v554 = vld [vmem:[%s551 + $0x8] sm:$0xf]
    %v555 = vld [vmem:[%s551 + $0xc] sm:$0xf]
    %v556 = vld [vmem:[%s551 + $0x10] sm:$0xf]
    %v557 = vld [vmem:[%s551 + $0x14] sm:$0xf]
    %v558 = vld [vmem:[%s551 + $0x18] sm:$0xf]
    %v559 = vld [vmem:[%s551 + $0x1c] sm:$0xf]
    %v560 = vld [vmem:[%s551 + $0x20] sm:$0xf]
    %v561 = vld [vmem:[%s551 + $0x24] sm:$0xf]
    %v562 = vld [vmem:[%s551 + $0x28] sm:$0xf]
    %v563 = vld [vmem:[%s551 + $0x2c] sm:$0xf]
    %v564 = vld [vmem:[%s551 + $0x30] sm:$0xf]
    %v565 = vld [vmem:[%s551 + $0x34] sm:$0xf]
    %v566 = vld [vmem:[%s551 + $0x38] sm:$0xf]
    %v567 = vld [vmem:[%s551 + $0x3c] sm:$0xf]
    %s568 = scalar_lea.vmem %s6, 1
    %v569 = vld [vmem:[%s568] sm:$0x1]
    %v571 = vlaneseq
    %v572 = vshrl.u32 %v571, 7
    %v573 = vsub.s32 0, %v572
    %v574 = vrot.slane %v569, %v573
    %v592 = vunpack.c.l.b16 %v552
    %v593 = vunpack.c.l.b16 %v553
    %v594 = vunpack.c.l.b16 %v554
    %v595 = vunpack.c.l.b16 %v555
    %v596 = vunpack.c.l.b16 %v556
    %v597 = vunpack.c.l.b16 %v557
    %v598 = vunpack.c.l.b16 %v558
    %v599 = vunpack.c.l.b16 %v559
    %v600 = vunpack.c.l.b16 %v560
    %v601 = vunpack.c.l.b16 %v561
    %v602 = vunpack.c.l.b16 %v562
    %v603 = vunpack.c.l.b16 %v563
    %v604 = vunpack.c.l.b16 %v564
    %v605 = vunpack.c.l.b16 %v565
    %v606 = vunpack.c.l.b16 %v566
    %v607 = vunpack.c.l.b16 %v567
    %v608 = vpack.c.b16 %v593, %v592
    %v609 = vpack.c.b16 %v595, %v594
    %v610 = vpack.c.b16 %v597, %v596
    %v611 = vpack.c.b16 %v599, %v598
    %v612 = vpack.c.b16 %v601, %v600
    %v613 = vpack.c.b16 %v603, %v602
    %v614 = vpack.c.b16 %v605, %v604
    %v615 = vpack.c.b16 %v607, %v606
    %624 = vmatprep.subr.bf16.mxu0 0
    %625 = vmatpush1.bf16.msra.mxu0 %v615
    %626 = vmatprep.subr.bf16.mxu0 0
    %627 = vmatpush1.bf16.msra.mxu0 %v614
    %628 = vmatprep.subr.bf16.mxu0 0
    %629 = vmatpush1.bf16.msra.mxu0 %v613
    %630 = vmatprep.subr.bf16.mxu0 0
    %631 = vmatpush1.bf16.msra.mxu0 %v612
    %632 = vmatprep.subr.bf16.mxu0 0
    %633 = vmatpush1.bf16.msra.mxu0 %v611
    %634 = vmatprep.subr.bf16.mxu0 0
    %635 = vmatpush1.bf16.msra.mxu0 %v610
    %636 = vmatprep.subr.bf16.mxu0 0
    %637 = vmatpush1.bf16.msra.mxu0 %v609
    %638 = vmatprep.subr.bf16.mxu0 0
    %639 = vmatpush1.bf16.msra.mxu0 %v608
    %640 = vmatprep.subr.bf16.mxu0 0
    %641 = vmatpush2.bf16.msra.mxu0 0
    %642 = vmatprep.subr.bf16.mxu0 0
    %643 = vmatpush2.bf16.msra.mxu0 0
    %644 = vmatprep.subr.bf16.mxu0 0
    %645 = vmatpush2.bf16.msra.mxu0 0
    %646 = vmatprep.subr.bf16.mxu0 0
    %647 = vmatpush2.bf16.msra.mxu0 0
    %648 = vmatprep.subr.bf16.mxu0 0
    %649 = vmatpush2.bf16.msra.mxu0 0
    %650 = vmatprep.subr.bf16.mxu0 0
    %651 = vmatpush2.bf16.msra.mxu0 0
    %652 = vmatprep.subr.bf16.mxu0 0
    %653 = vmatpush2.bf16.msra.mxu0 0
    %654 = vmatprep.subr.bf16.mxu0 0
    %655 = vmatpush2.bf16.msra.mxu0 0
    %656 = vmatprep.mubr.bf16.mxu0 0
    %657 = vmatmul.mubr.bf16.gmra.mxu0 %v543
    %v658 = vpop.f32.mrf.mxu0
    %v659 = vadd.f32 %v574, %v658
    %v660 = vpop.f32.mrf.mxu0
    %v661 = vpop.f32.mrf.mxu0
    %v662 = vadd.f32 %v574, %v661
    %v663 = vpop.f32.mrf.mxu0
    %664 = vmatprep.mubr.bf16.mxu0 0
    %665 = vmatmul.mubr.bf16.gmra.mxu0 %v544
    %v666 = vpop.f32.mrf.mxu0
    %v667 = vadd.f32 %v574, %v666
    %v668 = vpop.f32.mrf.mxu0
    %v669 = vpop.f32.mrf.mxu0
    %v670 = vadd.f32 %v574, %v669
    %v671 = vpop.f32.mrf.mxu0
    %672 = vmatprep.mubr.bf16.mxu0 0
    %673 = vmatmul.mubr.bf16.gmra.mxu0 %v545
    %v674 = vpop.f32.mrf.mxu0
    %v675 = vadd.f32 %v574, %v674
    %v676 = vpop.f32.mrf.mxu0
    %v677 = vpop.f32.mrf.mxu0
    %v678 = vadd.f32 %v574, %v677
    %v679 = vpop.f32.mrf.mxu0
    %680 = vmatprep.mubr.bf16.mxu0 0
    %681 = vmatmul.mubr.bf16.gmra.mxu0 %v546
    %v682 = vpop.f32.mrf.mxu0
    %v683 = vadd.f32 %v574, %v682
    %v684 = vpop.f32.mrf.mxu0
    %v685 = vpop.f32.mrf.mxu0
    %v686 = vadd.f32 %v574, %v685
    %v687 = vpop.f32.mrf.mxu0
    %688 = vmatprep.mubr.bf16.mxu0 0
    %689 = vmatmul.mubr.bf16.gmra.mxu0 %v547
    %v690 = vpop.f32.mrf.mxu0
    %v691 = vadd.f32 %v574, %v690
    %v692 = vpop.f32.mrf.mxu0
    %v693 = vpop.f32.mrf.mxu0
    %v694 = vadd.f32 %v574, %v693
    %v695 = vpop.f32.mrf.mxu0
    %696 = vmatprep.mubr.bf16.mxu0 0
    %697 = vmatmul.mubr.bf16.gmra.mxu0 %v548
    %v698 = vpop.f32.mrf.mxu0
    %v699 = vadd.f32 %v574, %v698
    %v700 = vpop.f32.mrf.mxu0
    %v701 = vpop.f32.mrf.mxu0
    %v702 = vadd.f32 %v574, %v701
    %v703 = vpop.f32.mrf.mxu0
    %704 = vmatprep.mubr.bf16.mxu0 0
    %705 = vmatmul.mubr.bf16.gmra.mxu0 %v549
    %v706 = vpop.f32.mrf.mxu0
    %v707 = vadd.f32 %v574, %v706
    %v708 = vpop.f32.mrf.mxu0
    %v709 = vpop.f32.mrf.mxu0
    %v710 = vadd.f32 %v574, %v709
    %v711 = vpop.f32.mrf.mxu0
    %712 = vmatprep.mubr.bf16.mxu0 0
    %713 = vmatmul.mubr.bf16.gmra.mxu0 %v550
    %v714 = vpop.f32.mrf.mxu0
    %v715 = vadd.f32 %v574, %v714
    %v716 = vpop.f32.mrf.mxu0
    %v717 = vpop.f32.mrf.mxu0
    %v718 = vadd.f32 %v574, %v717
    %v719 = vpop.f32.mrf.mxu0
    %720 = vdwg.mxu0
    %v721 = vmax.f32 %v659, 0.0
    %v722 = vmax.f32 %v662, 0.0
    %v723 = vmax.f32 %v667, 0.0
    %v724 = vmax.f32 %v670, 0.0
    %v725 = vmax.f32 %v675, 0.0
    %v726 = vmax.f32 %v678, 0.0
    %v727 = vmax.f32 %v683, 0.0
    %v728 = vmax.f32 %v686, 0.0
    %v729 = vmax.f32 %v691, 0.0
    %v730 = vmax.f32 %v694, 0.0
    %v731 = vmax.f32 %v699, 0.0
    %v732 = vmax.f32 %v702, 0.0
    %v733 = vmax.f32 %v707, 0.0
    %v734 = vmax.f32 %v710, 0.0
    %v735 = vmax.f32 %v715, 0.0
    %v736 = vmax.f32 %v718, 0.0
    %v737 = vadd.f32 %v721, %v527
    %v738 = vadd.f32 %v722, %v528
    %v739 = vadd.f32 %v723, %v529
    %v740 = vadd.f32 %v724, %v530
    %v741 = vadd.f32 %v725, %v531
    %v742 = vadd.f32 %v726, %v532
    %v743 = vadd.f32 %v727, %v533
    %v744 = vadd.f32 %v728, %v534
    %v745 = vadd.f32 %v729, %v535
    %v746 = vadd.f32 %v730, %v536
    %v747 = vadd.f32 %v731, %v537
    %v748 = vadd.f32 %v732, %v538
    %v749 = vadd.f32 %v733, %v539
    %v750 = vadd.f32 %v734, %v540
    %v751 = vadd.f32 %v735, %v541
    %v752 = vadd.f32 %v736, %v542
    %s753 = scalar_lea.vmem %s3, 2
    %v754 = vld [vmem:[%s753] sm:$0x1]
    %v756 = vlaneseq
    %v757 = vshrl.u32 %v756, 7
    %v758 = vsub.s32 0, %v757
    %v759 = vrot.slane %v754, %v758
    %v761 = vmul.f32 %v737, %v759
    %v762 = vmul.f32 %v738, %v759
    %v763 = vmul.f32 %v739, %v759
    %v764 = vmul.f32 %v740, %v759
    %v765 = vmul.f32 %v741, %v759
    %v766 = vmul.f32 %v742, %v759
    %v767 = vmul.f32 %v743, %v759
    %v768 = vmul.f32 %v744, %v759
    %v769 = vmul.f32 %v745, %v759
    %v770 = vmul.f32 %v746, %v759
    %v771 = vmul.f32 %v747, %v759
    %v772 = vmul.f32 %v748, %v759
    %v773 = vmul.f32 %v749, %v759
    %v774 = vmul.f32 %v750, %v759
    %v775 = vmul.f32 %v751, %v759
    %v776 = vmul.f32 %v752, %v759
    %s777 = scalar_lea.vmem %s4, 2
    %v778 = vld [vmem:[%s777] sm:$0x1]
    %v780 = vlaneseq
    %v781 = vshrl.u32 %v780, 7
    %v782 = vsub.s32 0, %v781
    %v783 = vrot.slane %v778, %v782
    %v785 = vadd.f32 %v761, %v783
    %v786 = vadd.f32 %v762, %v783
    %v787 = vadd.f32 %v763, %v783
    %v788 = vadd.f32 %v764, %v783
    %v789 = vadd.f32 %v765, %v783
    %v790 = vadd.f32 %v766, %v783
    %v791 = vadd.f32 %v767, %v783
    %v792 = vadd.f32 %v768, %v783
    %v793 = vadd.f32 %v769, %v783
    %v794 = vadd.f32 %v770, %v783
    %v795 = vadd.f32 %v771, %v783
    %v796 = vadd.f32 %v772, %v783
    %v797 = vadd.f32 %v773, %v783
    %v798 = vadd.f32 %v774, %v783
    %v799 = vadd.f32 %v775, %v783
    %v800 = vadd.f32 %v776, %v783
    %v801 = vpack.c.bf16 %v786, %v785
    %v802 = vpack.c.bf16 %v788, %v787
    %v803 = vpack.c.bf16 %v790, %v789
    %v804 = vpack.c.bf16 %v792, %v791
    %v805 = vpack.c.bf16 %v794, %v793
    %v806 = vpack.c.bf16 %v796, %v795
    %v807 = vpack.c.bf16 %v798, %v797
    %v808 = vpack.c.bf16 %v800, %v799
    %s809 = scalar_lea.vmem [#allocation2], 128
    %v810 = vld [vmem:[%s809] sm:$0xf]
    %v811 = vld [vmem:[%s809 + $0x4] sm:$0xf]
    %v812 = vld [vmem:[%s809 + $0x8] sm:$0xf]
    %v813 = vld [vmem:[%s809 + $0xc] sm:$0xf]
    %v814 = vld [vmem:[%s809 + $0x10] sm:$0xf]
    %v815 = vld [vmem:[%s809 + $0x14] sm:$0xf]
    %v816 = vld [vmem:[%s809 + $0x18] sm:$0xf]
    %v817 = vld [vmem:[%s809 + $0x1c] sm:$0xf]
    %v818 = vld [vmem:[%s809 + $0x20] sm:$0xf]
    %v819 = vld [vmem:[%s809 + $0x24] sm:$0xf]
    %v820 = vld [vmem:[%s809 + $0x28] sm:$0xf]
    %v821 = vld [vmem:[%s809 + $0x2c] sm:$0xf]
    %v822 = vld [vmem:[%s809 + $0x30] sm:$0xf]
    %v823 = vld [vmem:[%s809 + $0x34] sm:$0xf]
    %v824 = vld [vmem:[%s809 + $0x38] sm:$0xf]
    %v825 = vld [vmem:[%s809 + $0x3c] sm:$0xf]
    %s826 = scalar_lea.vmem %s6, 2
    %v827 = vld [vmem:[%s826] sm:$0x1]
    %v829 = vlaneseq
    %v830 = vshrl.u32 %v829, 7
    %v831 = vsub.s32 0, %v830
    %v832 = vrot.slane %v827, %v831
    %v850 = vunpack.c.l.b16 %v810
    %v851 = vunpack.c.l.b16 %v811
    %v852 = vunpack.c.l.b16 %v812
    %v853 = vunpack.c.l.b16 %v813
    %v854 = vunpack.c.l.b16 %v814
    %v855 = vunpack.c.l.b16 %v815
    %v856 = vunpack.c.l.b16 %v816
    %v857 = vunpack.c.l.b16 %v817
    %v858 = vunpack.c.l.b16 %v818
    %v859 = vunpack.c.l.b16 %v819
    %v860 = vunpack.c.l.b16 %v820
    %v861 = vunpack.c.l.b16 %v821
    %v862 = vunpack.c.l.b16 %v822
    %v863 = vunpack.c.l.b16 %v823
    %v864 = vunpack.c.l.b16 %v824
    %v865 = vunpack.c.l.b16 %v825
    %v866 = vpack.c.b16 %v851, %v850
    %v867 = vpack.c.b16 %v853, %v852
    %v868 = vpack.c.b16 %v855, %v854
    %v869 = vpack.c.b16 %v857, %v856
    %v870 = vpack.c.b16 %v859, %v858
    %v871 = vpack.c.b16 %v861, %v860
    %v872 = vpack.c.b16 %v863, %v862
    %v873 = vpack.c.b16 %v865, %v864
    %882 = vmatprep.subr.bf16.mxu0 0
    %883 = vmatpush1.bf16.msra.mxu0 %v873
    %884 = vmatprep.subr.bf16.mxu0 0
    %885 = vmatpush1.bf16.msra.mxu0 %v872
    %886 = vmatprep.subr.bf16.mxu0 0
    %887 = vmatpush1.bf16.msra.mxu0 %v871
    %888 = vmatprep.subr.bf16.mxu0 0
    %889 = vmatpush1.bf16.msra.mxu0 %v870
    %890 = vmatprep.subr.bf16.mxu0 0
    %891 = vmatpush1.bf16.msra.mxu0 %v869
    %892 = vmatprep.subr.bf16.mxu0 0
    %893 = vmatpush1.bf16.msra.mxu0 %v868
    %894 = vmatprep.subr.bf16.mxu0 0
    %895 = vmatpush1.bf16.msra.mxu0 %v867
    %896 = vmatprep.subr.bf16.mxu0 0
    %897 = vmatpush1.bf16.msra.mxu0 %v866
    %898 = vmatprep.subr.bf16.mxu0 0
    %899 = vmatpush2.bf16.msra.mxu0 0
    %900 = vmatprep.subr.bf16.mxu0 0
    %901 = vmatpush2.bf16.msra.mxu0 0
    %902 = vmatprep.subr.bf16.mxu0 0
    %903 = vmatpush2.bf16.msra.mxu0 0
    %904 = vmatprep.subr.bf16.mxu0 0
    %905 = vmatpush2.bf16.msra.mxu0 0
    %906 = vmatprep.subr.bf16.mxu0 0
    %907 = vmatpush2.bf16.msra.mxu0 0
    %908 = vmatprep.subr.bf16.mxu0 0
    %909 = vmatpush2.bf16.msra.mxu0 0
    %910 = vmatprep.subr.bf16.mxu0 0
    %911 = vmatpush2.bf16.msra.mxu0 0
    %912 = vmatprep.subr.bf16.mxu0 0
    %913 = vmatpush2.bf16.msra.mxu0 0
    %914 = vmatprep.mubr.bf16.mxu0 0
    %915 = vmatmul.mubr.bf16.gmra.mxu0 %v801
    %v916 = vpop.f32.mrf.mxu0
    %v917 = vadd.f32 %v832, %v916
    %v918 = vpop.f32.mrf.mxu0
    %v919 = vpop.f32.mrf.mxu0
    %v920 = vadd.f32 %v832, %v919
    %v921 = vpop.f32.mrf.mxu0
    %922 = vmatprep.mubr.bf16.mxu0 0
    %923 = vmatmul.mubr.bf16.gmra.mxu0 %v802
    %v924 = vpop.f32.mrf.mxu0
    %v925 = vadd.f32 %v832, %v924
    %v926 = vpop.f32.mrf.mxu0
    %v927 = vpop.f32.mrf.mxu0
    %v928 = vadd.f32 %v832, %v927
    %v929 = vpop.f32.mrf.mxu0
    %930 = vmatprep.mubr.bf16.mxu0 0
    %931 = vmatmul.mubr.bf16.gmra.mxu0 %v803
    %v932 = vpop.f32.mrf.mxu0
    %v933 = vadd.f32 %v832, %v932
    %v934 = vpop.f32.mrf.mxu0
    %v935 = vpop.f32.mrf.mxu0
    %v936 = vadd.f32 %v832, %v935
    %v937 = vpop.f32.mrf.mxu0
    %938 = vmatprep.mubr.bf16.mxu0 0
    %939 = vmatmul.mubr.bf16.gmra.mxu0 %v804
    %v940 = vpop.f32.mrf.mxu0
    %v941 = vadd.f32 %v832, %v940
    %v942 = vpop.f32.mrf.mxu0
    %v943 = vpop.f32.mrf.mxu0
    %v944 = vadd.f32 %v832, %v943
    %v945 = vpop.f32.mrf.mxu0
    %946 = vmatprep.mubr.bf16.mxu0 0
    %947 = vmatmul.mubr.bf16.gmra.mxu0 %v805
    %v948 = vpop.f32.mrf.mxu0
    %v949 = vadd.f32 %v832, %v948
    %v950 = vpop.f32.mrf.mxu0
    %v951 = vpop.f32.mrf.mxu0
    %v952 = vadd.f32 %v832, %v951
    %v953 = vpop.f32.mrf.mxu0
    %954 = vmatprep.mubr.bf16.mxu0 0
    %955 = vmatmul.mubr.bf16.gmra.mxu0 %v806
    %v956 = vpop.f32.mrf.mxu0
    %v957 = vadd.f32 %v832, %v956
    %v958 = vpop.f32.mrf.mxu0
    %v959 = vpop.f32.mrf.mxu0
    %v960 = vadd.f32 %v832, %v959
    %v961 = vpop.f32.mrf.mxu0
    %962 = vmatprep.mubr.bf16.mxu0 0
    %963 = vmatmul.mubr.bf16.gmra.mxu0 %v807
    %v964 = vpop.f32.mrf.mxu0
    %v965 = vadd.f32 %v832, %v964
    %v966 = vpop.f32.mrf.mxu0
    %v967 = vpop.f32.mrf.mxu0
    %v968 = vadd.f32 %v832, %v967
    %v969 = vpop.f32.mrf.mxu0
    %970 = vmatprep.mubr.bf16.mxu0 0
    %971 = vmatmul.mubr.bf16.gmra.mxu0 %v808
    %v972 = vpop.f32.mrf.mxu0
    %v973 = vadd.f32 %v832, %v972
    %v974 = vpop.f32.mrf.mxu0
    %v975 = vpop.f32.mrf.mxu0
    %v976 = vadd.f32 %v832, %v975
    %v977 = vpop.f32.mrf.mxu0
    %978 = vdwg.mxu0
    %v979 = vmax.f32 %v917, 0.0
    %v980 = vmax.f32 %v920, 0.0
    %v981 = vmax.f32 %v925, 0.0
    %v982 = vmax.f32 %v928, 0.0
    %v983 = vmax.f32 %v933, 0.0
    %v984 = vmax.f32 %v936, 0.0
    %v985 = vmax.f32 %v941, 0.0
    %v986 = vmax.f32 %v944, 0.0
    %v987 = vmax.f32 %v949, 0.0
    %v988 = vmax.f32 %v952, 0.0
    %v989 = vmax.f32 %v957, 0.0
    %v990 = vmax.f32 %v960, 0.0
    %v991 = vmax.f32 %v965, 0.0
    %v992 = vmax.f32 %v968, 0.0
    %v993 = vmax.f32 %v973, 0.0
    %v994 = vmax.f32 %v976, 0.0
    %v995 = vadd.f32 %v979, %v785
    %v996 = vadd.f32 %v980, %v786
    %v997 = vadd.f32 %v981, %v787
    %v998 = vadd.f32 %v982, %v788
    %v999 = vadd.f32 %v983, %v789
    %v1000 = vadd.f32 %v984, %v790
    %v1001 = vadd.f32 %v985, %v791
    %v1002 = vadd.f32 %v986, %v792
    %v1003 = vadd.f32 %v987, %v793
    %v1004 = vadd.f32 %v988, %v794
    %v1005 = vadd.f32 %v989, %v795
    %v1006 = vadd.f32 %v990, %v796
    %v1007 = vadd.f32 %v991, %v797
    %v1008 = vadd.f32 %v992, %v798
    %v1009 = vadd.f32 %v993, %v799
    %v1010 = vadd.f32 %v994, %v800
    %v1011 = vld [vmem:[%s7] sm:$0xff]
    %v1012 = vld [vmem:[%s8] sm:$0xff]
    %1014 = vset.pattern.permute.xlu0 0
    %1015 = vperm.xlu0 %1014, %v1012
    %v1016 = vpop.permute.xlu0 %1015
    %1018 = vmatprep.subr.mxu0 0.0
    %1019 = vmatpush1.xpose.msra.mxu0 %v1010
    %1020 = vmatprep.subr.mxu0 0.0
    %1021 = vmatpush1.xpose.msra.mxu0 %v1009
    %1022 = vmatprep.subr.mxu0 0.0
    %1023 = vmatpush1.xpose.msra.mxu0 %v1008
    %1024 = vmatprep.subr.mxu0 0.0
    %1025 = vmatpush1.xpose.msra.mxu0 %v1007
    %1026 = vmatprep.subr.mxu0 0.0
    %1027 = vmatpush1.xpose.msra.mxu0 %v1006
    %1028 = vmatprep.subr.mxu0 0.0
    %1029 = vmatpush1.xpose.msra.mxu0 %v1005
    %1030 = vmatprep.subr.mxu0 0.0
    %1031 = vmatpush1.xpose.msra.mxu0 %v1004
    %1032 = vmatprep.subr.mxu0 0.0
    %1033 = vmatpush1.xpose.msra.mxu0 %v1003
    %1034 = vmatprep.subr.mxu0 0.0
    %1035 = vmatpush1.xpose.msra.mxu0 %v1002
    %1036 = vmatprep.subr.mxu0 0.0
    %1037 = vmatpush1.xpose.msra.mxu0 %v1001
    %1038 = vmatprep.subr.mxu0 0.0
    %1039 = vmatpush1.xpose.msra.mxu0 %v1000
    %1040 = vmatprep.subr.mxu0 0.0
    %1041 = vmatpush1.xpose.msra.mxu0 %v999
    %1042 = vmatprep.subr.mxu0 0.0
    %1043 = vmatpush1.xpose.msra.mxu0 %v998
    %1044 = vmatprep.subr.mxu0 0.0
    %1045 = vmatpush1.xpose.msra.mxu0 %v997
    %1046 = vmatprep.subr.mxu0 0.0
    %1047 = vmatpush1.xpose.msra.mxu0 %v996
    %1048 = vmatprep.subr.mxu0 0.0
    %1049 = vmatpush1.xpose.msra.mxu0 %v995
    %1050 = vmatprep.subr.mxu0 0.0
    %1051 = vmatpush2.xpose.msra.mxu0 0.0
    %1052 = vmatprep.subr.mxu0 0.0
    %1053 = vmatpush2.xpose.msra.mxu0 0.0
    %1054 = vmatprep.subr.mxu0 0.0
    %1055 = vmatpush2.xpose.msra.mxu0 0.0
    %1056 = vmatprep.subr.mxu0 0.0
    %1057 = vmatpush2.xpose.msra.mxu0 0.0
    %1058 = vmatprep.subr.mxu0 0.0
    %1059 = vmatpush2.xpose.msra.mxu0 0.0
    %1060 = vmatprep.subr.mxu0 0.0
    %1061 = vmatpush2.xpose.msra.mxu0 0.0
    %1062 = vmatprep.subr.mxu0 0.0
    %1063 = vmatpush2.xpose.msra.mxu0 0.0
    %1064 = vmatprep.subr.mxu0 0.0
    %1065 = vmatpush2.xpose.msra.mxu0 0.0
    %1066 = vmatprep.subr.mxu0 0.0
    %1067 = vmatpush2.xpose.msra.mxu0 0.0
    %1068 = vmatprep.subr.mxu0 0.0
    %1069 = vmatpush2.xpose.msra.mxu0 0.0
    %1070 = vmatprep.subr.mxu0 0.0
    %1071 = vmatpush2.xpose.msra.mxu0 0.0
    %1072 = vmatprep.subr.mxu0 0.0
    %1073 = vmatpush2.xpose.msra.mxu0 0.0
    %1074 = vmatprep.subr.mxu0 0.0
    %1075 = vmatpush2.xpose.msra.mxu0 0.0
    %1076 = vmatprep.subr.mxu0 0.0
    %1077 = vmatpush2.xpose.msra.mxu0 0.0
    %1078 = vmatprep.subr.mxu0 0.0
    %1079 = vmatpush2.xpose.msra.mxu0 0.0
    %1080 = vmatprep.subr.mxu0 0.0
    %1081 = vmatpush2.xpose.msra.mxu0 0.0
    %1082 = vmatprep.mubr.f32.mxu0 0.0
    %1083 = vmatmul.mubr.f32.gmra.mxu0 %v1011
    %v1084 = vpop.f32.mrf.mxu0
    %v1085 = vadd.f32 %v1016, %v1084
    %v1086 = vpop.f32.mrf.mxu0
    %1087 = vdwg.mxu0
    %1088 = vst [vmem:[#allocation5] sm:$0xff] %v1085
    // Predicated region
    $region42: #{tpu_custom_call.1} parent=1 // pred_check
      _
    $region43: #{tpu_custom_call.1} parent=1 // pred_check_branch
      %1090 = sbr.rel (0) target = $region45
    $region44: #{tpu_custom_call.1} parent=1 // pred_region
      %s1092 = ssub.s32 128, 128
      %1093 = vsyncadd [#allocation4], %s1092
      %s1095 = sshll.u32 [#allocation5], 4
      %s1096 = int_to_ptr.vmem [resolvable:$true] %s1095
      %1098 = dma.vmem_to_hbm [thread:$0]  %s1096, 128, %s9, [#allocation4]
    $region45: #{tpu_custom_call.1} parent=1 // pred_fallthru
      _
    // Predicated region
    $region46: #{tpu_custom_call.1} parent=1 // pred_check
      _
    $region47: #{tpu_custom_call.1} parent=1 // pred_check_branch
      %1100 = sbr.rel (0) target = $region49
    $region48: #{tpu_custom_call.1} parent=1 // pred_region
      %1101 = dma.done [#allocation4], 128
    $region49: #{tpu_custom_call.1} parent=1 // pred_fallthru
      _
    %1102 = vsyncpa [#allocation3], 1
    %1103 = vsyncpa [#allocation4], 1

</llo_original>
